<compile_context>
chip_gen: v6e
topology: v6e:2x2x1
jax: 0.10.0
libtpu: 0.0.40
codegen_flags: <defaults>
</compile_context>

<pallas_src>
import functools
import math

import jax
import jax.numpy as jnp
from jax import lax
from jax.experimental import pallas as pl
from jax.experimental.pallas import tpu as pltpu


def _cdiv(a, b):
    return -(-a // b)


def _round_up(x, m):
    return _cdiv(x, m) * m


def _gather_kernel(idx_ref, wblk_ref, out_ref, *, num_categories, pack):
    # idx_ref:  (rows_tile, pack)   int32, VMEM  -- `pack` source rows per packed output row
    # wblk_ref: (Kp, pack*D)        VMEM         -- block-diagonal replicated embedding table
    # out_ref:  (rows_tile, pack*D) VMEM         -- lane-dense packed output tile
    rows = out_ref.shape[0]
    kp = wblk_ref.shape[0]

    idx = idx_ref[...]                                            # (rows, pack)
    # Clamp in-kernel and shift column g into its disjoint [g*C, (g+1)*C)
    # window of the block-diagonal contraction axis.
    col_off = lax.broadcasted_iota(jnp.int32, idx.shape, 1) * num_categories
    tgt = jnp.clip(idx, 0, num_categories - 1) + col_off          # (rows, pack)

    lanes = lax.broadcasted_iota(jnp.int32, (rows, kp), 1)
    hit = None
    for g in range(pack):                                         # static unroll, pack = 128/gcd(128, D)
        m = lanes == tgt[:, g:g + 1]                              # lane-broadcast compare
        hit = m if hit is None else jnp.logical_or(hit, m)

    w = wblk_ref[...]
    onehot = hit.astype(w.dtype)
    # Exactly one nonzero term contributes to each output element, so the
    # MXU contraction reproduces the gather exactly.
    out_ref[...] = jnp.dot(onehot, w,
                           preferred_element_type=jnp.float32).astype(out_ref.dtype)


def edge_embedder(category_indices, weight, *, target_tiles=4, max_tile_rows=2048):
    """Pallas TPU equivalent of EdgeEmbedder.forward (embedding row gather)."""
    C, D = weight.shape
    orig_shape = category_indices.shape

    idx = category_indices.reshape(-1).astype(jnp.int32)
    N = idx.shape[0]

    # Pack G source rows into each lane-dense output row; G*D == lcm(128, D).
    G = 128 // math.gcd(128, D)
    GD = G * D
    K = G * C
    Kp = _round_up(K, 128)            # pad contraction only to 128 (v5e-friendly)

    # Block-diagonal replicated table: rows [g*C, (g+1)*C), lanes [g*D, (g+1)*D)
    # hold `weight`; everything else (incl. the Kp padding rows) is zero.
    w_blk = jnp.zeros((Kp, GD), dtype=weight.dtype)
    for g in range(G):
        w_blk = w_blk.at[g * C:(g + 1) * C, g * D:(g + 1) * D].set(weight)

    # Pad the flat index vector to a multiple of G (<= G-1 extra entries).
    Np = _round_up(N, G)
    if Np != N:
        idx = jnp.pad(idx, (0, Np - N))
    R = Np // G
    idx2 = idx.reshape(R, G)

    # Packed-row tile: aim for >= target_tiles grid steps (v7x megacore), cap
    # per-step footprint, keep a multiple of 8 sublanes unless single-tile.
    rows_tile = min(_round_up(max(_cdiv(R, target_tiles), 1), 8), max_tile_rows)
    if rows_tile >= R:
        rows_tile = R
    n_tiles = _cdiv(R, rows_tile)

    itemsize = jnp.dtype(weight.dtype).itemsize
    vmem_bytes = (2 * rows_tile * (G * 4 + GD * itemsize)   # idx + out blocks, double-buffered
                  + 2 * Kp * GD * itemsize                  # resident table
                  + 2 * rows_tile * Kp * 4)                 # one-hot intermediates headroom
    vmem_limit = int(min(max(vmem_bytes + (4 << 20), 16 << 20), 64 << 20))

    out_packed = pl.pallas_call(
        functools.partial(_gather_kernel, num_categories=C, pack=G),
        out_shape=jax.ShapeDtypeStruct((R, GD), weight.dtype),
        grid=(n_tiles,),
        in_specs=[
            # Per-tile indices as a VMEM block (no SMEM scalar prefetch).
            pl.BlockSpec((rows_tile, G), lambda i: (i, 0)),
            # Whole block-diag table; constant block index => fetched once, resident.
            # TODO(synk): for multi-MiB tables switch to pl.ANY + manual DMA gather.
            pl.BlockSpec((Kp, GD), lambda i: (0, 0)),
        ],
        out_specs=pl.BlockSpec((rows_tile, GD), lambda i: (i, 0)),
        compiler_params=pltpu.CompilerParams(
            dimension_semantics=("parallel",),               # shard tiles across TCs on v7x
            vmem_limit_bytes=vmem_limit,
        ),
    )(idx2, w_blk)

    # (R, G*D) row-major == (Np, D) row-major: pure relabeling.  The [:N]
    # slice only exists when N % G != 0 (at most G-1 padded rows).
    out = out_packed.reshape(Np, D)
    if Np != N:
        out = out[:N]
    return out.reshape(*orig_shape, D)


if __name__ == "__main__":
    # Shapes consistent with GATv2Model: hid_dim-wide embeddings, one category
    # per directed edge of a dense toy graph, num_categories = n_orb + n_orb^2.
    n_orbits = 3
    num_categories = n_orbits + n_orbits ** 2    # 12
    hid_dim = 16                                 # embedding_dim == hid_dim
    n_nodes = 16

    key = jax.random.PRNGKey(0)
    k_w, k_idx, k_big, k_odd = jax.random.split(key, 4)

    # nn.Embedding default init: weight ~ N(0, 1), shape (C, D).
    weight = jax.random.normal(k_w, (num_categories, hid_dim), dtype=jnp.float32)

    # Dense-graph edge categories (one per (i, j) pair).
    edge_categories = jax.random.randint(
        k_idx, (n_nodes * n_nodes,), 0, num_categories, dtype=jnp.int32)
    out = jax.block_until_ready(edge_embedder(edge_categories, weight))
    ref = jnp.take(weight, edge_categories, axis=0)
    assert out.shape == (n_nodes * n_nodes, hid_dim)
    assert jnp.allclose(out, ref)                # exact f32 row gather

    # Larger input exercising the multi-tile (megacore-parallel) path.
    big_categories = jax.random.randint(
        k_big, (5000,), 0, num_categories, dtype=jnp.int32)
    out_big = jax.block_until_ready(edge_embedder(big_categories, weight))
    ref_big = jnp.take(weight, big_categories, axis=0)
    assert out_big.shape == (5000, hid_dim)
    assert jnp.allclose(out_big, ref_big)

    # Ragged size (not a multiple of the packing factor) exercising the
    # masked final tile / tail slice path.
    odd_categories = jax.random.randint(
        k_odd, (1001,), 0, num_categories, dtype=jnp.int32)
    out_odd = jax.block_until_ready(edge_embedder(odd_categories, weight))
    ref_odd = jnp.take(weight, odd_categories, axis=0)
    assert out_odd.shape == (1001, hid_dim)
    assert jnp.allclose(out_odd, ref_odd)

    print("KERNEL_OK")
</pallas_src>

<mosaic_0001>
module attributes {stable_mosaic.version = 11 : i64} {
  func.func @_gather_kernel(%arg0: i32, %arg1: memref<8x8xi32, #tpu.memory_space<vmem>>, %arg2: memref<128x128xf32, #tpu.memory_space<vmem>>, %arg3: memref<8x128xf32, #tpu.memory_space<vmem>>) attributes {dimension_semantics = [#tpu.dimension_semantics<parallel>], iteration_bounds = array<i64: 4>, scalar_prefetch = 0 : i64, scratch_operands = 0 : i64, tpu.core_type = #tpu.core_type<tc>, window_params = [{transform_indices = @transform_0, window_bounds = array<i64: 8, 8>}, {pipeline_mode = #tpu.pipeline_mode<synchronous>, transform_indices = @transform_1, window_bounds = array<i64: 128, 128>}, {transform_indices = @transform_2, window_bounds = array<i64: 8, 128>}]} {
    %c0 = arith.constant 0 : index
    %c0_0 = arith.constant 0 : index
    %0 = vector.load %arg1[%c0, %c0_0] : memref<8x8xi32, #tpu.memory_space<vmem>>, vector<8x8xi32>
    %1 = tpu.iota {dimensions = array<i32: 1>} : vector<8x8xi32>
    %c12_i32 = arith.constant 12 : i32
    %2 = vector.broadcast %c12_i32 : i32 to vector<8x8xi32>
    %3 = arith.muli %1, %2 : vector<8x8xi32>
    %c0_i32 = arith.constant 0 : i32
    %c11_i32 = arith.constant 11 : i32
    %4 = vector.broadcast %c0_i32 : i32 to vector<8x8xi32>
    %5 = arith.maxsi %4, %0 : vector<8x8xi32>
    %6 = vector.broadcast %c11_i32 : i32 to vector<8x8xi32>
    %7 = arith.minsi %6, %5 : vector<8x8xi32>
    %8 = arith.addi %7, %3 : vector<8x8xi32>
    %9 = tpu.iota {dimensions = array<i32: 1>} : vector<8x128xi32>
    %10 = vector.extract_strided_slice %8 {offsets = [0, 0], sizes = [8, 1], strides = [1, 1]} : vector<8x8xi32> to vector<8x1xi32>
    %11 = vector.broadcast %10 : vector<8x1xi32> to vector<8x128xi32>
    %12 = arith.cmpi eq, %9, %11 : vector<8x128xi32>
    %13 = vector.extract_strided_slice %8 {offsets = [0, 1], sizes = [8, 1], strides = [1, 1]} : vector<8x8xi32> to vector<8x1xi32>
    %14 = vector.broadcast %13 : vector<8x1xi32> to vector<8x128xi32>
    %15 = arith.cmpi eq, %9, %14 : vector<8x128xi32>
    %16 = arith.ori %12, %15 : vector<8x128xi1>
    %17 = vector.extract_strided_slice %8 {offsets = [0, 2], sizes = [8, 1], strides = [1, 1]} : vector<8x8xi32> to vector<8x1xi32>
    %18 = vector.broadcast %17 : vector<8x1xi32> to vector<8x128xi32>
    %19 = arith.cmpi eq, %9, %18 : vector<8x128xi32>
    %20 = arith.ori %16, %19 : vector<8x128xi1>
    %21 = vector.extract_strided_slice %8 {offsets = [0, 3], sizes = [8, 1], strides = [1, 1]} : vector<8x8xi32> to vector<8x1xi32>
    %22 = vector.broadcast %21 : vector<8x1xi32> to vector<8x128xi32>
    %23 = arith.cmpi eq, %9, %22 : vector<8x128xi32>
    %24 = arith.ori %20, %23 : vector<8x128xi1>
    %25 = vector.extract_strided_slice %8 {offsets = [0, 4], sizes = [8, 1], strides = [1, 1]} : vector<8x8xi32> to vector<8x1xi32>
    %26 = vector.broadcast %25 : vector<8x1xi32> to vector<8x128xi32>
    %27 = arith.cmpi eq, %9, %26 : vector<8x128xi32>
    %28 = arith.ori %24, %27 : vector<8x128xi1>
    %29 = vector.extract_strided_slice %8 {offsets = [0, 5], sizes = [8, 1], strides = [1, 1]} : vector<8x8xi32> to vector<8x1xi32>
    %30 = vector.broadcast %29 : vector<8x1xi32> to vector<8x128xi32>
    %31 = arith.cmpi eq, %9, %30 : vector<8x128xi32>
    %32 = arith.ori %28, %31 : vector<8x128xi1>
    %33 = vector.extract_strided_slice %8 {offsets = [0, 6], sizes = [8, 1], strides = [1, 1]} : vector<8x8xi32> to vector<8x1xi32>
    %34 = vector.broadcast %33 : vector<8x1xi32> to vector<8x128xi32>
    %35 = arith.cmpi eq, %9, %34 : vector<8x128xi32>
    %36 = arith.ori %32, %35 : vector<8x128xi1>
    %37 = vector.extract_strided_slice %8 {offsets = [0, 7], sizes = [8, 1], strides = [1, 1]} : vector<8x8xi32> to vector<8x1xi32>
    %38 = vector.broadcast %37 : vector<8x1xi32> to vector<8x128xi32>
    %39 = arith.cmpi eq, %9, %38 : vector<8x128xi32>
    %40 = arith.ori %36, %39 : vector<8x128xi1>
    %c0_1 = arith.constant 0 : index
    %c0_2 = arith.constant 0 : index
    %41 = vector.load %arg2[%c0_1, %c0_2] : memref<128x128xf32, #tpu.memory_space<vmem>>, vector<128x128xf32>
    %42 = arith.extui %40 : vector<8x128xi1> to vector<8x128xi32>
    %43 = arith.sitofp %42 : vector<8x128xi32> to vector<8x128xf32>
    %cst = arith.constant dense<0.000000e+00> : vector<8x128xf32>
    %44 = tpu.matmul %43, %41, %cst {dimension_numbers = #tpu.dot_dimension_numbers<[1], [0], [0], [1], [0, 0, 1, 1], [], []>} : vector<8x128xf32>, vector<128x128xf32>, vector<8x128xf32> -> vector<8x128xf32>
    %c0_3 = arith.constant 0 : index
    %c0_4 = arith.constant 0 : index
    %45 = vector.load %arg3[%c0_3, %c0_4] : memref<8x128xf32, #tpu.memory_space<vmem>>, vector<8x128xf32>
    tpu.vector_store %arg3[%c0_3, %c0_4], %44 {strides = array<i32>} : memref<8x128xf32, #tpu.memory_space<vmem>>, vector<8x128xf32>,
    return
  }
  func.func @transform_0(%arg0: i32) -> (i32, i32) {
    %c0_i32 = arith.constant 0 : i32
    %c0_i32_0 = arith.constant 0 : i32
    return %arg0, %c0_i32 : i32, i32
  }
  func.func @transform_1(%arg0: i32) -> (i32, i32) {
    %c0_i32 = arith.constant 0 : i32
    %c0_i32_0 = arith.constant 0 : i32
    %c0_i32_1 = arith.constant 0 : i32
    return %c0_i32, %c0_i32_0 : i32, i32
  }
  func.func @transform_2(%arg0: i32) -> (i32, i32) {
    %c0_i32 = arith.constant 0 : i32
    %c0_i32_0 = arith.constant 0 : i32
    return %arg0, %c0_i32 : i32, i32
  }
}

</mosaic_0001>

<llo_original>
// kernel: tpu_custom_call.1
$region0: #{tpu_custom_call.1}
  #allocation0 [shape = 'u32[]', space=smem, size = 0x4, offset = 0x4, fixed_abs, tag = 'smem constant byte address 0x4 - core index']
  #allocation1 [shape = 'u32[144,128]{1,0:T(1,128)}', space=vmem, size = 0x12000, scoped, tag = 'internal scratch']
  %s0 = inlined_call_operand.vmem [shape: s32[32,8], index: 0, kind: input, shape index: {}]
  %s1 = inlined_call_operand.hbm [shape: f32[128,128], index: 1, kind: input, shape index: {}]
  %s2 = inlined_call_operand.hbm [shape: f32[32,128], index: 2, kind: output, shape index: {}]
  %s3 = sld [smem:[#allocation0]]
  $region45: #{tpu_custom_call.1} parent=0
    _
  %s5 = ssub.s32 1, %s3
  %s6 = scalar_select 0, %s5, %s3
  $region1: #{tpu_custom_call.1} parent=0
    #allocation2 [shape = 'u8[65536]{0}', space=vmem, size = 0x10000, scoped, tag = 'input window, operand 1, single buffered']
    #allocation3 [shape = 's32[2]{0}', space=sflag, size = 0x8, scoped, tag = 'scoped memory for tpu_custom_call.1']
    #allocation4 [shape = 's32[2]{0}', space=sflag, size = 0x8, scoped, tag = 'scoped memory for tpu_custom_call.1']
    #allocation5 [shape = 'u8[8192]{0}', space=vmem, size = 0x2000, scoped, tag = 'output window, operand 0']
    %7 = vsyncpa [#allocation3], 0
    %8 = vsyncpa [#allocation4], 0
    %s9 = scalar_lea.sflag [#allocation4], 1
    %10 = vsyncpa %s9, 0
    loop: start=0, step=1, limit=6
    $region2: #{tpu_custom_call.1} parent=1 // loop_pre_header
      _
    $region3: #{tpu_custom_call.1} parent=1 // loop_header
      %s12 = sphi 0, %s16
      %p13 = scmp.ge.s32.totalorder %s12, 6
      %s22 = sphi 0, %s24
      %s25 = sphi 0, %s22
      %s26 = sphi 0, %s25
      %s42 = sphi 0, %s26
      %s46 = sphi 0, %s46
      %s48 = sphi 0, %s46
      %s49 = sphi 0, %s48
      %s63 = sphi 0, %s49
      %s69 = sphi 0, %s71
      %s72 = sphi 0, %s69
      %s73 = sphi 0, %s72
      %s89 = sphi 0, %s73
    $region4: #{tpu_custom_call.1} parent=1 // loop_header_branch
      %15 = sbr.rel (%p13) target = $region8
    $region5: #{tpu_custom_call.1} parent=1 // loop_body
      %s17 = ssub.s32 %s12, 1
      %s18 = ssub.s32 %s12, 2
      %s19 = sadd.s32 %s12, 1
      %s20 = ssub.s32 %s12, %s19
      %p21 = scmp.eq.s32.totalorder %s20, 0
      %s23 = sadd.s32 %s22, 1
      %s24 = scalar_select %p21, %s22, %s23
      %p27 = pneg %p21
      %p28 = scmp.eq.s32.totalorder %s12, 3
      %p29 = por %p27, %p28
      %p30 = scmp.ne.s32.totalorder %s22, %s25
      %p31 = scmp.eq.s32.totalorder %s12, 0
      %p32 = por %p30, %p31
      %p33 = scmp.ne.s32.totalorder %s22, %s25
      %p34 = scmp.eq.s32.totalorder %s17, 3
      %p35 = por %p33, %p34
      %p36 = scmp.ne.s32.totalorder %s25, %s26
      %p37 = scmp.eq.s32.totalorder %s17, 0
      %p38 = por %p36, %p37
      %p39 = scmp.ne.s32.totalorder %s25, %s26
      %p40 = scmp.eq.s32.totalorder %s18, 3
      %p41 = por %p39, %p40
      %p43 = scmp.ne.s32.totalorder %s26, %s42
      %p44 = scmp.eq.s32.totalorder %s18, 0
      %p45 = por %p43, %p44
      %s47 = sadd.s32 %s46, 1
      %p50 = scmp.eq.s32.totalorder %s12, 3
      %p51 = scmp.ne.s32.totalorder %s46, %s48
      %p52 = scmp.eq.s32.totalorder %s12, 0
      %p53 = por %p51, %p52
      %p54 = scmp.ne.s32.totalorder %s46, %s48
      %p55 = scmp.eq.s32.totalorder %s17, 3
      %p56 = por %p54, %p55
      %p57 = scmp.ne.s32.totalorder %s48, %s49
      %p58 = scmp.eq.s32.totalorder %s17, 0
      %p59 = por %p57, %p58
      %p60 = scmp.ne.s32.totalorder %s48, %s49
      %p61 = scmp.eq.s32.totalorder %s18, 3
      %p62 = por %p60, %p61
      %p64 = scmp.ne.s32.totalorder %s49, %s63
      %p65 = scmp.eq.s32.totalorder %s18, 0
      %p66 = por %p64, %p65
      %s67 = ssub.s32 %s12, %s19
      %p68 = scmp.eq.s32.totalorder %s67, 0
      %s70 = sadd.s32 %s69, 1
      %s71 = scalar_select %p68, %s69, %s70
      %p74 = pneg %p68
      %p75 = scmp.eq.s32.totalorder %s12, 3
      %p76 = por %p74, %p75
      %p77 = scmp.ne.s32.totalorder %s69, %s72
      %p78 = scmp.eq.s32.totalorder %s12, 0
      %p79 = por %p77, %p78
      %p80 = scmp.ne.s32.totalorder %s69, %s72
      %p81 = scmp.eq.s32.totalorder %s17, 3
      %p82 = por %p80, %p81
      %p83 = scmp.ne.s32.totalorder %s72, %s73
      %p84 = scmp.eq.s32.totalorder %s17, 0
      %p85 = por %p83, %p84
      %p86 = scmp.ne.s32.totalorder %s72, %s73
      %p87 = scmp.eq.s32.totalorder %s18, 3
      %p88 = por %p86, %p87
      %p90 = scmp.ne.s32.totalorder %s73, %s89
      %p91 = scmp.eq.s32.totalorder %s18, 0
      %p92 = por %p90, %p91
      %p93 = scmp.le.s32.totalorder 1, %s12
      %p94 = scmp.lt.s32.totalorder %s12, 5
      %p95 = pnand %p93, %p94
      %p96 = pneg %p95
      // Predicated region
      $region9: #{tpu_custom_call.1} parent=5 // pred_check
        _
      $region10: #{tpu_custom_call.1} parent=5 // pred_check_branch
        %98 = sbr.rel (%p95) target = $region12
      $region11: #{tpu_custom_call.1} parent=5 // pred_region
        %s99 = ssub.s32 %s12, 1
        // Predicated region
        $region13: #{tpu_custom_call.1} parent=11 // pred_check
          %p100 = pneg %p59
        $region14: #{tpu_custom_call.1} parent=11 // pred_check_branch
          %102 = sbr.rel (%p100) target = $region16
        $region15: #{tpu_custom_call.1} parent=11 // pred_region
          %s104 = ssub.s32 2048, 2048
          %105 = vsyncadd [#allocation3], %s104
          %s106 = sshll.u32 [#allocation2], 4
          %s107 = int_to_ptr.vmem [resolvable:$true] %s106
          %112 = dma.hbm_to_vmem [thread:$0]  %s1, 2048, %s107, [#allocation3], 128, 128, 8
        $region16: #{tpu_custom_call.1} parent=11 // pred_fallthru
          _
      $region12: #{tpu_custom_call.1} parent=5 // pred_fallthru
        _
      %p113 = scmp.lt.s32.totalorder %s12, 4
      // Predicated region
      $region17: #{tpu_custom_call.1} parent=5 // pred_check
        %p114 = pneg %p113
      $region18: #{tpu_custom_call.1} parent=5 // pred_check_branch
        %116 = sbr.rel (%p114) target = $region20
      $region19: #{tpu_custom_call.1} parent=5 // pred_region
        // Predicated region
        $region21: #{tpu_custom_call.1} parent=19 // pred_check
          %p117 = pneg %p32
        $region22: #{tpu_custom_call.1} parent=19 // pred_check_branch
          %119 = sbr.rel (%p117) target = $region24
        $region23: #{tpu_custom_call.1} parent=19 // pred_region
          %p120 = scmp.lt.s32.totalorder %s12, 3
          %s121 = scalar_select %p120, %s12, 3
          %s122 = smul.addr %s121, 8
          %s123 = scalar_lea.vmem %s0, %s122
        $region24: #{tpu_custom_call.1} parent=19 // pred_fallthru
          _
      $region20: #{tpu_custom_call.1} parent=5 // pred_fallthru
        _
      %p124 = scmp.le.s32.totalorder 1, %s12
      %p125 = scmp.lt.s32.totalorder %s12, 5
      %p126 = pnand %p124, %p125
      %p127 = pneg %p126
      // Predicated region
      $region25: #{tpu_custom_call.1} parent=5 // pred_check
        _
      $region26: #{tpu_custom_call.1} parent=5 // pred_check_branch
        %129 = sbr.rel (%p126) target = $region28
      $region27: #{tpu_custom_call.1} parent=5 // pred_region
        %s130 = ssub.s32 %s12, 1
        // Predicated region
        $region29: #{tpu_custom_call.1} parent=27 // pred_check
          %p131 = pneg %p59
        $region30: #{tpu_custom_call.1} parent=27 // pred_check_branch
          %133 = sbr.rel (%p131) target = $region32
        $region31: #{tpu_custom_call.1} parent=27 // pred_region
          %134 = dma.done [#allocation3], 2048
        $region32: #{tpu_custom_call.1} parent=27 // pred_fallthru
          _
        %p135 = scmp.lt.s32.totalorder %s17, 3
        %s136 = scalar_select %p135, %s17, 3
        %s137 = smul.addr %s136, 8
        %s138 = scalar_lea.vmem %s0, %s137
        %p139 = pneg %p38
        %p140 = pneg %p35
        %p141 = pneg %p59
        %p142 = pneg %p56
        %p143 = pneg %p85
        %p144 = pneg %p82
        %s145 = sand.u32 %s72, 1
        %s146 = scalar_lea.sflag [#allocation4], %s145
        %s147 = sand.u32 %s72, 1
        %s148 = smul.addr %s147, 8
        %s149 = scalar_lea.vmem [#allocation5], %s148
        %p150 = scmp.lt.s32.totalorder %s17, 3
        %s151 = scalar_select %p150, %s17, 3
        %s152 = smul.addr %s151, 8
        %s153 = scalar_lea.vmem %s0, %s152
        %v154 = vld [vmem:[%s153] sm:$0xff]
        %v155 = vlaneseq
        %v156 = vand.u32 %v155, 127
        %v157 = vmul.u32 %v156, 12
        %vm158 = vcmp.gt.s32.totalorder %v154, 0
        %v159 = vsel %vm158, %v154, 0
        %vm160 = vcmp.lt.s32.totalorder %v159, 11
        %v161 = vsel %vm160, %v159, 11
        %v162 = vadd.s32 %v161, %v157
        %163 = vset.pattern.permute.xlu0 0
        %164 = vperm.xlu0 %163, %v162
        %v165 = vpop.permute.xlu0 %164
        %vm166 = vcmp.eq.s32.totalorder %v156, %v165
        %167 = vset.pattern.permute.xlu0 1
        %168 = vperm.xlu0 %167, %v162
        %v169 = vpop.permute.xlu0 %168
        %vm170 = vcmp.eq.s32.totalorder %v156, %v169
        %vm171 = vmor %vm166, %vm170
        %172 = vset.pattern.permute.xlu0 2
        %173 = vperm.xlu0 %172, %v162
        %v174 = vpop.permute.xlu0 %173
        %vm175 = vcmp.eq.s32.totalorder %v156, %v174
        %vm176 = vmor %vm171, %vm175
        %177 = vset.pattern.permute.xlu0 3
        %178 = vperm.xlu0 %177, %v162
        %v179 = vpop.permute.xlu0 %178
        %vm180 = vcmp.eq.s32.totalorder %v156, %v179
        %vm181 = vmor %vm176, %vm180
        %182 = vset.pattern.permute.xlu0 4
        %183 = vperm.xlu0 %182, %v162
        %v184 = vpop.permute.xlu0 %183
        %vm185 = vcmp.eq.s32.totalorder %v156, %v184
        %vm186 = vmor %vm181, %vm185
        %187 = vset.pattern.permute.xlu0 5
        %188 = vperm.xlu0 %187, %v162
        %v189 = vpop.permute.xlu0 %188
        %vm190 = vcmp.eq.s32.totalorder %v156, %v189
        %vm191 = vmor %vm186, %vm190
        %192 = vset.pattern.permute.xlu0 6
        %193 = vperm.xlu0 %192, %v162
        %v194 = vpop.permute.xlu0 %193
        %vm195 = vcmp.eq.s32.totalorder %v156, %v194
        %vm196 = vmor %vm191, %vm195
        %197 = vset.pattern.permute.xlu0 7
        %198 = vperm.xlu0 %197, %v162
        %v199 = vpop.permute.xlu0 %198
        %vm200 = vcmp.eq.s32.totalorder %v156, %v199
        %vm201 = vmor %vm196, %vm200
        %v202 = vld [vmem:[#allocation2] sm:$0xff]
        %v203 = vld [vmem:[#allocation2 + $0x8] sm:$0xff]
        %v204 = vld [vmem:[#allocation2 + $0x10] sm:$0xff]
        %v205 = vld [vmem:[#allocation2 + $0x18] sm:$0xff]
        %v206 = vld [vmem:[#allocation2 + $0x20] sm:$0xff]
        %v207 = vld [vmem:[#allocation2 + $0x28] sm:$0xff]
        %v208 = vld [vmem:[#allocation2 + $0x30] sm:$0xff]
        %v209 = vld [vmem:[#allocation2 + $0x38] sm:$0xff]
        %v210 = vld [vmem:[#allocation2 + $0x40] sm:$0xff]
        %v211 = vld [vmem:[#allocation2 + $0x48] sm:$0xff]
        %v212 = vld [vmem:[#allocation2 + $0x50] sm:$0xff]
        %v213 = vld [vmem:[#allocation2 + $0x58] sm:$0xff]
        %v214 = vld [vmem:[#allocation2 + $0x60] sm:$0xff]
        %v215 = vld [vmem:[#allocation2 + $0x68] sm:$0xff]
        %v216 = vld [vmem:[#allocation2 + $0x70] sm:$0xff]
        %v217 = vld [vmem:[#allocation2 + $0x78] sm:$0xff]
        %v218 = vsel %vm201, 1, 0
        %v219 = vcvt.s32.f32 %v218
        %220 = vmatprep.subr.mxu0 0.0
        %221 = vmatpush1.msra.mxu0 %v217
        %222 = vmatprep.subr.mxu0 0.0
        %223 = vmatpush1.msra.mxu0 %v216
        %224 = vmatprep.subr.mxu0 0.0
        %225 = vmatpush1.msra.mxu0 %v215
        %226 = vmatprep.subr.mxu0 0.0
        %227 = vmatpush1.msra.mxu0 %v214
        %228 = vmatprep.subr.mxu0 0.0
        %229 = vmatpush1.msra.mxu0 %v213
        %230 = vmatprep.subr.mxu0 0.0
        %231 = vmatpush1.msra.mxu0 %v212
        %232 = vmatprep.subr.mxu0 0.0
        %233 = vmatpush1.msra.mxu0 %v211
        %234 = vmatprep.subr.mxu0 0.0
        %235 = vmatpush1.msra.mxu0 %v210
        %236 = vmatprep.subr.mxu0 0.0
        %237 = vmatpush1.msra.mxu0 %v209
        %238 = vmatprep.subr.mxu0 0.0
        %239 = vmatpush1.msra.mxu0 %v208
        %240 = vmatprep.subr.mxu0 0.0
        %241 = vmatpush1.msra.mxu0 %v207
        %242 = vmatprep.subr.mxu0 0.0
        %243 = vmatpush1.msra.mxu0 %v206
        %244 = vmatprep.subr.mxu0 0.0
        %245 = vmatpush1.msra.mxu0 %v205
        %246 = vmatprep.subr.mxu0 0.0
        %247 = vmatpush1.msra.mxu0 %v204
        %248 = vmatprep.subr.mxu0 0.0
        %249 = vmatpush1.msra.mxu0 %v203
        %250 = vmatprep.subr.mxu0 0.0
        %251 = vmatpush1.msra.mxu0 %v202
        %252 = vmatprep.subr.mxu0 0.0
        %253 = vmatpush2.msra.mxu0 0.0
        %254 = vmatprep.subr.mxu0 0.0
        %255 = vmatpush2.msra.mxu0 0.0
        %256 = vmatprep.subr.mxu0 0.0
        %257 = vmatpush2.msra.mxu0 0.0
        %258 = vmatprep.subr.mxu0 0.0
        %259 = vmatpush2.msra.mxu0 0.0
        %260 = vmatprep.subr.mxu0 0.0
        %261 = vmatpush2.msra.mxu0 0.0
        %262 = vmatprep.subr.mxu0 0.0
        %263 = vmatpush2.msra.mxu0 0.0
        %264 = vmatprep.subr.mxu0 0.0
        %265 = vmatpush2.msra.mxu0 0.0
        %266 = vmatprep.subr.mxu0 0.0
        %267 = vmatpush2.msra.mxu0 0.0
        %268 = vmatprep.subr.mxu0 0.0
        %269 = vmatpush2.msra.mxu0 0.0
        %270 = vmatprep.subr.mxu0 0.0
        %271 = vmatpush2.msra.mxu0 0.0
        %272 = vmatprep.subr.mxu0 0.0
        %273 = vmatpush2.msra.mxu0 0.0
        %274 = vmatprep.subr.mxu0 0.0
        %275 = vmatpush2.msra.mxu0 0.0
        %276 = vmatprep.subr.mxu0 0.0
        %277 = vmatpush2.msra.mxu0 0.0
        %278 = vmatprep.subr.mxu0 0.0
        %279 = vmatpush2.msra.mxu0 0.0
        %280 = vmatprep.subr.mxu0 0.0
        %281 = vmatpush2.msra.mxu0 0.0
        %282 = vmatprep.subr.mxu0 0.0
        %283 = vmatpush2.msra.mxu0 0.0
        %284 = vmatprep.mubr.f32.mxu0 0.0
        %285 = vmatmul.mubr.f32.gmra.mxu0 %v219
        %v286 = vpop.f32.mrf.mxu0
        %v287 = vadd.f32 0.0, %v286
        %v288 = vpop.f32.mrf.mxu0
        %289 = vdwg.mxu0
        %290 = vst [vmem:[%s149] sm:$0xff] %v287
        %s291 = sand.u32 %s72, 1
        %s292 = scalar_lea.sflag [#allocation4], %s291
        %s293 = sand.u32 %s72, 1
        %s294 = smul.addr %s293, 8
        %s295 = scalar_lea.vmem [#allocation5], %s294
        // Predicated region
        $region33: #{tpu_custom_call.1} parent=27 // pred_check
          %p296 = pneg %p82
        $region34: #{tpu_custom_call.1} parent=27 // pred_check_branch
          %298 = sbr.rel (%p296) target = $region36
        $region35: #{tpu_custom_call.1} parent=27 // pred_region
          %s300 = ssub.s32 128, 128
          %301 = vsyncadd %s292, %s300
          %s302 = smul.addr %s17, 128
          %s303 = scalar_lea.hbm %s2, %s302
          %s305 = sshll.u32 %s295, 4
          %s306 = int_to_ptr.vmem [resolvable:$true] %s305
          %308 = dma.vmem_to_hbm [thread:$0]  %s306, 128, %s303, %s292
        $region36: #{tpu_custom_call.1} parent=27 // pred_fallthru
          _
      $region28: #{tpu_custom_call.1} parent=5 // pred_fallthru
        _
      %p309 = scmp.le.s32.totalorder 2, %s12
      // Predicated region
      $region37: #{tpu_custom_call.1} parent=5 // pred_check
        %p310 = pneg %p309
      $region38: #{tpu_custom_call.1} parent=5 // pred_check_branch
        %312 = sbr.rel (%p310) target = $region40
      $region39: #{tpu_custom_call.1} parent=5 // pred_region
        %s313 = ssub.s32 %s12, 2
        // Predicated region
        $region41: #{tpu_custom_call.1} parent=39 // pred_check
          %p314 = pneg %p88
        $region42: #{tpu_custom_call.1} parent=39 // pred_check_branch
          %316 = sbr.rel (%p314) target = $region44
        $region43: #{tpu_custom_call.1} parent=39 // pred_region
          %s317 = sand.u32 %s73, 1
          %s318 = scalar_lea.sflag [#allocation4], %s317
          %s319 = sand.u32 %s73, 1
          %s320 = smul.addr %s319, 8
          %s321 = scalar_lea.vmem [#allocation5], %s320
          %322 = dma.done %s318, 128
        $region44: #{tpu_custom_call.1} parent=39 // pred_fallthru
          _
      $region40: #{tpu_custom_call.1} parent=5 // pred_fallthru
        _
    $region6: #{tpu_custom_call.1} parent=1 // loop_footer
      %s16 = sadd.s32 1, %s12
    $region7: #{tpu_custom_call.1} parent=1 // loop_footer_branch
      %11 = sbr.rel target = $region3
    $region8: #{tpu_custom_call.1} parent=1 // loop_exit
      _
    %323 = vsyncpa [#allocation3], 1
    %s324 = scalar_lea.sflag [#allocation3], 1
    %325 = vsyncpa %s324, 1
    %326 = vsyncpa [#allocation4], 1
    %s327 = scalar_lea.sflag [#allocation4], 1
    %328 = vsyncpa %s327, 1

</llo_original>
